<compile_context>
chip_gen: v5e
topology: v5e:2x2
jax: 0.10.0
libtpu: 0.0.40
codegen_flags: <defaults>
</compile_context>

<pallas_src>
import math

import jax
import jax.numpy as jnp
from jax.experimental import pallas as pl
from jax.experimental.pallas import tpu as pltpu

# ---- small, module-consistent config -------------------------------------
EMB = 32            # CFG.image_embedding
EP_LEN = 8          # ep_len
PROJ = 32           # projection_dim (divisible by num_heads)
HEADS = 8
HEAD_DIM = PROJ // HEADS
BATCH = 2
LN_EPS = 1e-5
NEG_BIG = -1e30


# ------------------------- fused forward kernel ----------------------------
def _fused_kernel(x_ref, rep_in_ref, emask_in_ref, w1blk_ref, b1blk_ref,
                  wq_ref, bq_ref, wk_ref, bk_ref, wv_ref, bv_ref,
                  rep_m_ref, hmask_ref, abias_ref, gsum_ref,
                  wo_ref, bo_ref, lnw_ref, lnb_ref,
                  rep_out_ref, emask_out_ref, selt_ref, o_ref):
    f32 = jnp.float32
    bsz = x_ref.shape[0]

    # ---- projection_1 evaluated directly in the (B*EP_LEN, PROJ) domain ----
    # Row-replicate x (rows b*EP_LEN..(b+1)*EP_LEN-1 all equal x[b,:]) with a
    # sublane broadcast + one 8-aligned sublane concat (equivalent to Sel @ x,
    # without a degenerate K=B matmul).
    xrows = jnp.concatenate(
        [jnp.broadcast_to(x_ref[b:b + 1, :], (EP_LEN, EMB)) for b in range(bsz)],
        axis=0)                                                      # (N, EMB)
    # Spread each row across its own EMB-wide lane block (constant matmul on
    # an otherwise idle MXU) and mask; one MXU push against the block-arranged
    # weight then yields projection_1 already flattened to (N, PROJ).
    xblk = jnp.dot(xrows, rep_in_ref[...],
                   preferred_element_type=f32) * emask_in_ref[...]  # (N, EP_LEN*EMB)
    s = jnp.dot(xblk, w1blk_ref[...],
                preferred_element_type=f32) + b1blk_ref[...]        # (N, PROJ)
    # TODO(synk): ReluSIG is not defined in the provided source; assuming the
    # common x * sigmoid(x) (SiLU-style) gate.  Dropout(0.3) is identity at
    # inference.
    s = s * jax.nn.sigmoid(s)

    # ---- multi-head self-attention, lane-dense over (head, key) ------------
    # 1/sqrt(head_dim) is already folded into wq/bq.
    q = jnp.dot(s, wq_ref[...], preferred_element_type=f32) + bq_ref[...]   # (N, PROJ)

    # Sublane-replicate s HEADS times with a constant selector, project to
    # K / V, and zero the lanes that do not belong to each row's head:
    # kbig_t[h*N+j, c] = k[j, c] * (c in head h), same for V.
    s_rep = jnp.dot(rep_m_ref[...], s, preferred_element_type=f32)          # (H*N, PROJ)
    kbig_t = (jnp.dot(s_rep, wk_ref[...], preferred_element_type=f32)
              + bk_ref[...]) * hmask_ref[...]                               # (H*N, PROJ)
    vbig = (jnp.dot(s_rep, wv_ref[...], preferred_element_type=f32)
            + bv_ref[...]) * hmask_ref[...]                                 # (H*N, PROJ)

    # All heads' scores in one lane-dense (N, H*N) tile; abias is the
    # precomputed cross-batch -1e30 mask (0 within a batch block).
    scores = jax.lax.dot_general(q, kbig_t, (((1,), (1,)), ((), ())),
                                 preferred_element_type=f32) + abias_ref[...]
    # Global per-row max is mathematically equivalent to per-head max here.
    scores = scores - jnp.max(scores, axis=-1, keepdims=True)
    e = jnp.exp(scores)                                                     # (N, H*N)
    # Per-head denominators broadcast across each head's key block with one
    # MXU push against a constant block-diagonal ones matrix.
    denom = jnp.dot(e, gsum_ref[...], preferred_element_type=f32)
    p = e * pl.reciprocal(denom, approx=True)
    # Attention dropout(0.2) is identity at inference.
    attn = jnp.dot(p, vbig, preferred_element_type=f32)                     # (N, PROJ)

    # ---- out_proj + residual + LayerNorm(PROJ) ------------------------------
    out = jnp.dot(attn, wo_ref[...], preferred_element_type=f32) + bo_ref[...]
    res = s + out
    mu = jnp.mean(res, axis=-1, keepdims=True)
    var = jnp.mean((res - mu) ** 2, axis=-1, keepdims=True)
    y = (res - mu) * jax.lax.rsqrt(var + LN_EPS)
    y = y * lnw_ref[...] + lnb_ref[...]                                     # (N, PROJ)

    # ---- lane-dense store: (N, PROJ) -> (B, EP_LEN*PROJ) via constant MXU ---
    yexp = jnp.dot(y, rep_out_ref[...],
                   preferred_element_type=f32) * emask_out_ref[...]         # (N, EP_LEN*PROJ)
    o_ref[...] = jnp.dot(selt_ref[...], yexp, preferred_element_type=f32)   # (B, EP_LEN*PROJ)


# ------------------------ one-time parameter prep ---------------------------
def prepare_params(params, batch):
    """Hoist all transposes / reshapes / constant tables out of the hot path."""
    f32 = jnp.float32
    n = batch * EP_LEN
    hn = HEADS * n
    ep = jnp.arange(EP_LEN, dtype=jnp.int32)
    row_e = jnp.tile(ep, (batch,))                            # e(r) for r = b*EP_LEN + e

    # projection_1 folded into the block domain.
    rep_in = (jnp.arange(EMB)[:, None]
              == (jnp.arange(EP_LEN * EMB)[None, :] % EMB)).astype(f32)      # (EMB, EP_LEN*EMB)
    emask_in = (row_e[:, None]
                == (jnp.arange(EP_LEN * EMB)[None, :] // EMB)).astype(f32)   # (N, EP_LEN*EMB)
    w1blk = (params["w1"].reshape(EP_LEN, PROJ, EMB)
             .transpose(0, 2, 1).reshape(EP_LEN * EMB, PROJ))                 # (EP_LEN*EMB, PROJ)
    b1blk = jnp.tile(params["b1"].reshape(EP_LEN, PROJ), (batch, 1))          # (N, PROJ)

    # MHA packed in_proj split; fold 1/sqrt(head_dim) into Q.
    wq, wk, wv = jnp.split(params["in_w"], 3, axis=0)
    bq, bk, bv = jnp.split(params["in_b"], 3)
    scale = 1.0 / math.sqrt(HEAD_DIM)

    rep_m = ((jnp.arange(hn)[:, None] % n)
             == jnp.arange(n)[None, :]).astype(f32)                           # (H*N, N)
    hmask = ((jnp.arange(hn)[:, None] // n)
             == (jnp.arange(PROJ)[None, :] // HEAD_DIM)).astype(f32)          # (H*N, PROJ)
    row_b = jnp.arange(n, dtype=jnp.int32) // EP_LEN
    col_b = (jnp.arange(hn, dtype=jnp.int32) % n) // EP_LEN
    abias = jnp.where(row_b[:, None] == col_b[None, :], 0.0, NEG_BIG).astype(f32)  # (N, H*N)
    gsum = ((jnp.arange(hn)[:, None] // n)
            == (jnp.arange(hn)[None, :] // n)).astype(f32)                    # (H*N, H*N)

    # Lane-dense output relayout constants.
    rep_out = (jnp.arange(PROJ)[:, None]
               == (jnp.arange(EP_LEN * PROJ)[None, :] % PROJ)).astype(f32)    # (PROJ, EP_LEN*PROJ)
    emask_out = (row_e[:, None]
                 == (jnp.arange(EP_LEN * PROJ)[None, :] // PROJ)).astype(f32) # (N, EP_LEN*PROJ)
    selt = (jnp.arange(batch)[:, None]
            == (jnp.arange(n)[None, :] // EP_LEN)).astype(f32)                # (B, N)

    return {
        "rep_in": rep_in, "emask_in": emask_in, "w1blk": w1blk, "b1blk": b1blk,
        "wq": wq.T * scale, "bq": (bq * scale).reshape(1, -1),
        "wk": wk.T, "bk": bk.reshape(1, -1),
        "wv": wv.T, "bv": bv.reshape(1, -1),
        "rep_m": rep_m, "hmask": hmask, "abias": abias, "gsum": gsum,
        "wo": params["out_w"].T, "bo": params["out_b"].reshape(1, -1),
        "lnw": params["ln_w"].reshape(1, -1), "lnb": params["ln_b"].reshape(1, -1),
        "rep_out": rep_out, "emask_out": emask_out, "selt": selt,
    }


# ---------------------------- wrapper ---------------------------------------
def image_projection_forward(x, prepped):
    B = x.shape[0]
    args = (x, prepped["rep_in"], prepped["emask_in"], prepped["w1blk"], prepped["b1blk"],
            prepped["wq"], prepped["bq"], prepped["wk"], prepped["bk"],
            prepped["wv"], prepped["bv"], prepped["rep_m"], prepped["hmask"],
            prepped["abias"], prepped["gsum"], prepped["wo"], prepped["bo"],
            prepped["lnw"], prepped["lnb"], prepped["rep_out"], prepped["emask_out"],
            prepped["selt"])
    # Grid-less at B=2 (total work ~100 KFLOPs): one launch, all operands
    # resident in VMEM.  For large B, add a batch grid marked "parallel"
    # (v7x megacore) and drop the O(B^2) abias/gsum constants.
    out = pl.pallas_call(
        _fused_kernel,
        out_shape=jax.ShapeDtypeStruct((B, EP_LEN * PROJ), jnp.float32),
        in_specs=[pl.BlockSpec(memory_space=pltpu.MemorySpace.VMEM) for _ in args],
        out_specs=pl.BlockSpec(memory_space=pltpu.MemorySpace.VMEM),
    )(*args)
    # Free metadata-only reshape in the wrapper (lane-dense store in-kernel).
    return out.reshape(B, EP_LEN, PROJ)


# ------------------------ deterministic params ------------------------------
def init_params(key):
    ks = jax.random.split(key, 8)
    return {
        # projection_1 = nn.Linear(EMB, EP_LEN*PROJ)
        "w1": 0.05 * jax.random.normal(ks[0], (EP_LEN * PROJ, EMB), jnp.float32),
        "b1": 0.05 * jax.random.normal(ks[1], (EP_LEN * PROJ,), jnp.float32),
        # nn.MultiheadAttention in_proj (3E, E) / (3E,), out_proj (E, E) / (E,)
        "in_w": 0.05 * jax.random.normal(ks[2], (3 * PROJ, PROJ), jnp.float32),
        "in_b": 0.05 * jax.random.normal(ks[3], (3 * PROJ,), jnp.float32),
        "out_w": 0.05 * jax.random.normal(ks[4], (PROJ, PROJ), jnp.float32),
        "out_b": 0.05 * jax.random.normal(ks[5], (PROJ,), jnp.float32),
        # nn.LayerNorm(PROJ)
        "ln_w": jnp.ones((PROJ,), jnp.float32) + 0.05 * jax.random.normal(ks[6], (PROJ,), jnp.float32),
        "ln_b": 0.05 * jax.random.normal(ks[7], (PROJ,), jnp.float32),
    }


# --------------------------- pure-JAX reference ------------------------------
def reference_forward(x, params):
    h = x @ params["w1"].T + params["b1"]
    h = h * jax.nn.sigmoid(h)
    s = h.reshape(-1, EP_LEN, PROJ)
    B = s.shape[0]
    wq, wk, wv = jnp.split(params["in_w"], 3, axis=0)
    bq, bk, bv = jnp.split(params["in_b"], 3)
    q = s @ wq.T + bq
    k = s @ wk.T + bk
    v = s @ wv.T + bv
    qh = q.reshape(B, EP_LEN, HEADS, HEAD_DIM).transpose(0, 2, 1, 3)
    kh = k.reshape(B, EP_LEN, HEADS, HEAD_DIM).transpose(0, 2, 1, 3)
    vh = v.reshape(B, EP_LEN, HEADS, HEAD_DIM).transpose(0, 2, 1, 3)
    sc = jnp.einsum("bhqd,bhkd->bhqk", qh, kh) / math.sqrt(HEAD_DIM)
    p = jax.nn.softmax(sc, axis=-1)
    a = jnp.einsum("bhqk,bhkd->bhqd", p, vh).transpose(0, 2, 1, 3).reshape(B, EP_LEN, PROJ)
    o = a @ params["out_w"].T + params["out_b"]
    res = s + o
    mu = res.mean(-1, keepdims=True)
    var = ((res - mu) ** 2).mean(-1, keepdims=True)
    y = (res - mu) / jnp.sqrt(var + LN_EPS)
    return y * params["ln_w"] + params["ln_b"]


if __name__ == "__main__":
    key = jax.random.PRNGKey(0)
    k_x, k_p = jax.random.split(key)
    x = jax.random.normal(k_x, (BATCH, EMB), jnp.float32)
    params = init_params(k_p)
    prepped = prepare_params(params, BATCH)

    out = image_projection_forward(x, prepped)
    out = jax.block_until_ready(out)

    ref = jax.block_until_ready(reference_forward(x, params))
    assert out.shape == (BATCH, EP_LEN, PROJ), out.shape
    assert jnp.allclose(out, ref, atol=2e-3, rtol=2e-3), float(jnp.max(jnp.abs(out - ref)))

    print("KERNEL_OK")
</pallas_src>

<mosaic_0001>
module attributes {stable_mosaic.version = 11 : i64} {
  func.func @_fused_kernel(%arg0: memref<2x32xf32, #tpu.memory_space<vmem>>, %arg1: memref<32x256xf32, #tpu.memory_space<vmem>>, %arg2: memref<16x256xf32, #tpu.memory_space<vmem>>, %arg3: memref<256x32xf32, #tpu.memory_space<vmem>>, %arg4: memref<16x32xf32, #tpu.memory_space<vmem>>, %arg5: memref<32x32xf32, #tpu.memory_space<vmem>>, %arg6: memref<1x32xf32, #tpu.memory_space<vmem>>, %arg7: memref<32x32xf32, #tpu.memory_space<vmem>>, %arg8: memref<1x32xf32, #tpu.memory_space<vmem>>, %arg9: memref<32x32xf32, #tpu.memory_space<vmem>>, %arg10: memref<1x32xf32, #tpu.memory_space<vmem>>, %arg11: memref<128x16xf32, #tpu.memory_space<vmem>>, %arg12: memref<128x32xf32, #tpu.memory_space<vmem>>, %arg13: memref<16x128xf32, #tpu.memory_space<vmem>>, %arg14: memref<128x128xf32, #tpu.memory_space<vmem>>, %arg15: memref<32x32xf32, #tpu.memory_space<vmem>>, %arg16: memref<1x32xf32, #tpu.memory_space<vmem>>, %arg17: memref<1x32xf32, #tpu.memory_space<vmem>>, %arg18: memref<1x32xf32, #tpu.memory_space<vmem>>, %arg19: memref<32x256xf32, #tpu.memory_space<vmem>>, %arg20: memref<16x256xf32, #tpu.memory_space<vmem>>, %arg21: memref<2x16xf32, #tpu.memory_space<vmem>>, %arg22: memref<2x256xf32, #tpu.memory_space<vmem>>) attributes {dimension_semantics = [], scalar_prefetch = 0 : i64, scratch_operands = 0 : i64, tpu.core_type = #tpu.core_type<tc>} {
    %c0 = arith.constant 0 : index
    %c0_0 = arith.constant 0 : index
    %0 = vector.load %arg0[%c0, %c0_0] : memref<2x32xf32, #tpu.memory_space<vmem>>, vector<1x32xf32>
    %1 = vector.shape_cast %0 : vector<1x32xf32> to vector<1x32xf32>
    %2 = vector.broadcast %1 : vector<1x32xf32> to vector<8x32xf32>
    %c1 = arith.constant 1 : index
    %c0_1 = arith.constant 0 : index
    %3 = vector.load %arg0[%c1, %c0_1] : memref<2x32xf32, #tpu.memory_space<vmem>>, vector<1x32xf32>
    %4 = vector.shape_cast %3 : vector<1x32xf32> to vector<1x32xf32>
    %5 = vector.broadcast %4 : vector<1x32xf32> to vector<8x32xf32>
    %6 = tpu.concatenate %2, %5 in 0 : vector<8x32xf32>, vector<8x32xf32> -> vector<16x32xf32>
    %c0_2 = arith.constant 0 : index
    %c0_3 = arith.constant 0 : index
    %7 = vector.load %arg1[%c0_2, %c0_3] : memref<32x256xf32, #tpu.memory_space<vmem>>, vector<32x256xf32>
    %cst = arith.constant dense<0.000000e+00> : vector<16x256xf32>
    %8 = tpu.matmul %6, %7, %cst {dimension_numbers = #tpu.dot_dimension_numbers<[1], [0], [0], [1], [0, 0, 1, 1], [], []>} : vector<16x32xf32>, vector<32x256xf32>, vector<16x256xf32> -> vector<16x256xf32>
    %c0_4 = arith.constant 0 : index
    %c0_5 = arith.constant 0 : index
    %9 = vector.load %arg2[%c0_4, %c0_5] : memref<16x256xf32, #tpu.memory_space<vmem>>, vector<16x256xf32>
    %10 = arith.mulf %8, %9 : vector<16x256xf32>
    %c0_6 = arith.constant 0 : index
    %c0_7 = arith.constant 0 : index
    %11 = vector.load %arg3[%c0_6, %c0_7] : memref<256x32xf32, #tpu.memory_space<vmem>>, vector<256x32xf32>
    %cst_8 = arith.constant dense<0.000000e+00> : vector<16x32xf32>
    %12 = tpu.matmul %10, %11, %cst_8 {dimension_numbers = #tpu.dot_dimension_numbers<[1], [0], [0], [1], [0, 0, 1, 1], [], []>} : vector<16x256xf32>, vector<256x32xf32>, vector<16x32xf32> -> vector<16x32xf32>
    %c0_9 = arith.constant 0 : index
    %c0_10 = arith.constant 0 : index
    %13 = vector.load %arg4[%c0_9, %c0_10] : memref<16x32xf32, #tpu.memory_space<vmem>>, vector<16x32xf32>
    %14 = arith.addf %12, %13 : vector<16x32xf32>
    %15 = arith.negf %14 : vector<16x32xf32>
    %16 = math.exp %15 : vector<16x32xf32>
    %cst_11 = arith.constant 1.000000e+00 : f32
    %17 = vector.broadcast %cst_11 : f32 to vector<16x32xf32>
    %18 = arith.addf %17, %16 : vector<16x32xf32>
    %19 = arith.divf %17, %18 : vector<16x32xf32>
    %20 = arith.mulf %14, %19 : vector<16x32xf32>
    %c0_12 = arith.constant 0 : index
    %c0_13 = arith.constant 0 : index
    %21 = vector.load %arg5[%c0_12, %c0_13] : memref<32x32xf32, #tpu.memory_space<vmem>>, vector<32x32xf32>
    %cst_14 = arith.constant dense<0.000000e+00> : vector<16x32xf32>
    %22 = tpu.matmul %20, %21, %cst_14 {dimension_numbers = #tpu.dot_dimension_numbers<[1], [0], [0], [1], [0, 0, 1, 1], [], []>} : vector<16x32xf32>, vector<32x32xf32>, vector<16x32xf32> -> vector<16x32xf32>
    %c0_15 = arith.constant 0 : index
    %c0_16 = arith.constant 0 : index
    %23 = vector.load %arg6[%c0_15, %c0_16] : memref<1x32xf32, #tpu.memory_space<vmem>>, vector<1x32xf32>
    %24 = vector.broadcast %23 : vector<1x32xf32> to vector<16x32xf32>
    %25 = arith.addf %22, %24 : vector<16x32xf32>
    %c0_17 = arith.constant 0 : index
    %c0_18 = arith.constant 0 : index
    %26 = vector.load %arg11[%c0_17, %c0_18] : memref<128x16xf32, #tpu.memory_space<vmem>>, vector<128x16xf32>
    %cst_19 = arith.constant dense<0.000000e+00> : vector<128x32xf32>
    %27 = tpu.matmul %26, %20, %cst_19 {dimension_numbers = #tpu.dot_dimension_numbers<[1], [0], [0], [1], [0, 0, 1, 1], [], []>} : vector<128x16xf32>, vector<16x32xf32>, vector<128x32xf32> -> vector<128x32xf32>
    %c0_20 = arith.constant 0 : index
    %c0_21 = arith.constant 0 : index
    %28 = vector.load %arg7[%c0_20, %c0_21] : memref<32x32xf32, #tpu.memory_space<vmem>>, vector<32x32xf32>
    %cst_22 = arith.constant dense<0.000000e+00> : vector<128x32xf32>
    %29 = tpu.matmul %27, %28, %cst_22 {dimension_numbers = #tpu.dot_dimension_numbers<[1], [0], [0], [1], [0, 0, 1, 1], [], []>} : vector<128x32xf32>, vector<32x32xf32>, vector<128x32xf32> -> vector<128x32xf32>
    %c0_23 = arith.constant 0 : index
    %c0_24 = arith.constant 0 : index
    %30 = vector.load %arg8[%c0_23, %c0_24] : memref<1x32xf32, #tpu.memory_space<vmem>>, vector<1x32xf32>
    %31 = vector.broadcast %30 : vector<1x32xf32> to vector<128x32xf32>
    %32 = arith.addf %29, %31 : vector<128x32xf32>
    %c0_25 = arith.constant 0 : index
    %c0_26 = arith.constant 0 : index
    %33 = vector.load %arg12[%c0_25, %c0_26] : memref<128x32xf32, #tpu.memory_space<vmem>>, vector<128x32xf32>
    %34 = arith.mulf %32, %33 : vector<128x32xf32>
    %c0_27 = arith.constant 0 : index
    %c0_28 = arith.constant 0 : index
    %35 = vector.load %arg9[%c0_27, %c0_28] : memref<32x32xf32, #tpu.memory_space<vmem>>, vector<32x32xf32>
    %cst_29 = arith.constant dense<0.000000e+00> : vector<128x32xf32>
    %36 = tpu.matmul %27, %35, %cst_29 {dimension_numbers = #tpu.dot_dimension_numbers<[1], [0], [0], [1], [0, 0, 1, 1], [], []>} : vector<128x32xf32>, vector<32x32xf32>, vector<128x32xf32> -> vector<128x32xf32>
    %c0_30 = arith.constant 0 : index
    %c0_31 = arith.constant 0 : index
    %37 = vector.load %arg10[%c0_30, %c0_31] : memref<1x32xf32, #tpu.memory_space<vmem>>, vector<1x32xf32>
    %38 = vector.broadcast %37 : vector<1x32xf32> to vector<128x32xf32>
    %39 = arith.addf %36, %38 : vector<128x32xf32>
    %c0_32 = arith.constant 0 : index
    %c0_33 = arith.constant 0 : index
    %40 = vector.load %arg12[%c0_32, %c0_33] : memref<128x32xf32, #tpu.memory_space<vmem>>, vector<128x32xf32>
    %41 = arith.mulf %39, %40 : vector<128x32xf32>
    %cst_34 = arith.constant dense<0.000000e+00> : vector<16x128xf32>
    %42 = tpu.matmul %25, %34, %cst_34 {dimension_numbers = #tpu.dot_dimension_numbers<[1], [1], [0], [0], [0, 0, 1, 0], [], []>} : vector<16x32xf32>, vector<128x32xf32>, vector<16x128xf32> -> vector<16x128xf32>
    %c0_35 = arith.constant 0 : index
    %c0_36 = arith.constant 0 : index
    %43 = vector.load %arg13[%c0_35, %c0_36] : memref<16x128xf32, #tpu.memory_space<vmem>>, vector<16x128xf32>
    %44 = arith.addf %42, %43 : vector<16x128xf32>
    %cst_37 = arith.constant dense<0xFF800000> : vector<16xf32>
    %45 = vector.multi_reduction <maximumf>, %44, %cst_37 [1] : vector<16x128xf32> to vector<16xf32>
    %46 = vector.shape_cast %45 : vector<16xf32> to vector<16x1xf32>
    %47 = vector.broadcast %46 : vector<16x1xf32> to vector<16x128xf32>
    %48 = arith.subf %44, %47 : vector<16x128xf32>
    %49 = math.exp %48 : vector<16x128xf32>
    %c0_38 = arith.constant 0 : index
    %c0_39 = arith.constant 0 : index
    %50 = vector.load %arg14[%c0_38, %c0_39] : memref<128x128xf32, #tpu.memory_space<vmem>>, vector<128x128xf32>
    %cst_40 = arith.constant dense<0.000000e+00> : vector<16x128xf32>
    %51 = tpu.matmul %49, %50, %cst_40 {dimension_numbers = #tpu.dot_dimension_numbers<[1], [0], [0], [1], [0, 0, 1, 1], [], []>} : vector<16x128xf32>, vector<128x128xf32>, vector<16x128xf32> -> vector<16x128xf32>
    %52 = tpu.reciprocal %51 {approx = true} : vector<16x128xf32> -> vector<16x128xf32>
    %53 = arith.mulf %49, %52 : vector<16x128xf32>
    %cst_41 = arith.constant dense<0.000000e+00> : vector<16x32xf32>
    %54 = tpu.matmul %53, %41, %cst_41 {dimension_numbers = #tpu.dot_dimension_numbers<[1], [0], [0], [1], [0, 0, 1, 1], [], []>} : vector<16x128xf32>, vector<128x32xf32>, vector<16x32xf32> -> vector<16x32xf32>
    %c0_42 = arith.constant 0 : index
    %c0_43 = arith.constant 0 : index
    %55 = vector.load %arg15[%c0_42, %c0_43] : memref<32x32xf32, #tpu.memory_space<vmem>>, vector<32x32xf32>
    %cst_44 = arith.constant dense<0.000000e+00> : vector<16x32xf32>
    %56 = tpu.matmul %54, %55, %cst_44 {dimension_numbers = #tpu.dot_dimension_numbers<[1], [0], [0], [1], [0, 0, 1, 1], [], []>} : vector<16x32xf32>, vector<32x32xf32>, vector<16x32xf32> -> vector<16x32xf32>
    %c0_45 = arith.constant 0 : index
    %c0_46 = arith.constant 0 : index
    %57 = vector.load %arg16[%c0_45, %c0_46] : memref<1x32xf32, #tpu.memory_space<vmem>>, vector<1x32xf32>
    %58 = vector.broadcast %57 : vector<1x32xf32> to vector<16x32xf32>
    %59 = arith.addf %56, %58 : vector<16x32xf32>
    %60 = arith.addf %20, %59 : vector<16x32xf32>
    %cst_47 = arith.constant dense<0.000000e+00> : vector<16xf32>
    %61 = vector.multi_reduction <add>, %60, %cst_47 [1] : vector<16x32xf32> to vector<16xf32>
    %62 = vector.shape_cast %61 : vector<16xf32> to vector<16x1xf32>
    %cst_48 = arith.constant 3.200000e+01 : f32
    %63 = vector.broadcast %cst_48 : f32 to vector<16x1xf32>
    %64 = arith.divf %62, %63 : vector<16x1xf32>
    %65 = vector.broadcast %64 : vector<16x1xf32> to vector<16x32xf32>
    %66 = arith.subf %60, %65 : vector<16x32xf32>
    %67 = arith.mulf %66, %66 : vector<16x32xf32>
    %cst_49 = arith.constant dense<0.000000e+00> : vector<16xf32>
    %68 = vector.multi_reduction <add>, %67, %cst_49 [1] : vector<16x32xf32> to vector<16xf32>
    %69 = vector.shape_cast %68 : vector<16xf32> to vector<16x1xf32>
    %cst_50 = arith.constant 3.200000e+01 : f32
    %70 = vector.broadcast %cst_50 : f32 to vector<16x1xf32>
    %71 = arith.divf %69, %70 : vector<16x1xf32>
    %72 = vector.broadcast %64 : vector<16x1xf32> to vector<16x32xf32>
    %73 = arith.subf %60, %72 : vector<16x32xf32>
    %cst_51 = arith.constant 9.99999974E-6 : f32
    %74 = vector.broadcast %cst_51 : f32 to vector<16x1xf32>
    %75 = arith.addf %71, %74 : vector<16x1xf32>
    %76 = math.rsqrt %75 : vector<16x1xf32>
    %77 = vector.broadcast %76 : vector<16x1xf32> to vector<16x32xf32>
    %78 = arith.mulf %73, %77 : vector<16x32xf32>
    %c0_52 = arith.constant 0 : index
    %c0_53 = arith.constant 0 : index
    %79 = vector.load %arg17[%c0_52, %c0_53] : memref<1x32xf32, #tpu.memory_space<vmem>>, vector<1x32xf32>
    %80 = vector.broadcast %79 : vector<1x32xf32> to vector<16x32xf32>
    %81 = arith.mulf %78, %80 : vector<16x32xf32>
    %c0_54 = arith.constant 0 : index
    %c0_55 = arith.constant 0 : index
    %82 = vector.load %arg18[%c0_54, %c0_55] : memref<1x32xf32, #tpu.memory_space<vmem>>, vector<1x32xf32>
    %83 = vector.broadcast %82 : vector<1x32xf32> to vector<16x32xf32>
    %84 = arith.addf %81, %83 : vector<16x32xf32>
    %c0_56 = arith.constant 0 : index
    %c0_57 = arith.constant 0 : index
    %85 = vector.load %arg19[%c0_56, %c0_57] : memref<32x256xf32, #tpu.memory_space<vmem>>, vector<32x256xf32>
    %cst_58 = arith.constant dense<0.000000e+00> : vector<16x256xf32>
    %86 = tpu.matmul %84, %85, %cst_58 {dimension_numbers = #tpu.dot_dimension_numbers<[1], [0], [0], [1], [0, 0, 1, 1], [], []>} : vector<16x32xf32>, vector<32x256xf32>, vector<16x256xf32> -> vector<16x256xf32>
    %c0_59 = arith.constant 0 : index
    %c0_60 = arith.constant 0 : index
    %87 = vector.load %arg20[%c0_59, %c0_60] : memref<16x256xf32, #tpu.memory_space<vmem>>, vector<16x256xf32>
    %88 = arith.mulf %86, %87 : vector<16x256xf32>
    %c0_61 = arith.constant 0 : index
    %c0_62 = arith.constant 0 : index
    %89 = vector.load %arg21[%c0_61, %c0_62] : memref<2x16xf32, #tpu.memory_space<vmem>>, vector<2x16xf32>
    %cst_63 = arith.constant dense<0.000000e+00> : vector<2x256xf32>
    %90 = tpu.matmul %89, %88, %cst_63 {dimension_numbers = #tpu.dot_dimension_numbers<[1], [0], [0], [1], [0, 0, 1, 1], [], []>} : vector<2x16xf32>, vector<16x256xf32>, vector<2x256xf32> -> vector<2x256xf32>
    %c0_64 = arith.constant 0 : index
    %c0_65 = arith.constant 0 : index
    %91 = vector.load %arg22[%c0_64, %c0_65] : memref<2x256xf32, #tpu.memory_space<vmem>>, vector<2x256xf32>
    tpu.vector_store %arg22[%c0_64, %c0_65], %90 {strides = array<i32>} : memref<2x256xf32, #tpu.memory_space<vmem>>, vector<2x256xf32>,
    return
  }
}

</mosaic_0001>

<llo_original>
// kernel: tpu_custom_call.1
$region0: #{tpu_custom_call.1}
  #allocation0 [shape = 'u32[]', space=smem, size = 0x4, offset = 0x4, fixed_abs, tag = 'smem constant byte address 0x4 - core index']
  #allocation1 [shape = 'u32[72,128]{1,0:T(1,128)}', space=vmem, size = 0x9000, scoped, tag = 'internal scratch']
  %s0 = inlined_call_operand.vmem [shape: f32[2,32], index: 0, kind: input, shape index: {}]
  %s1 = inlined_call_operand.vmem [shape: f32[32,256], index: 1, kind: input, shape index: {}]
  %s2 = inlined_call_operand.vmem [shape: f32[16,256], index: 2, kind: input, shape index: {}]
  %s3 = inlined_call_operand.vmem [shape: f32[256,32], index: 3, kind: input, shape index: {}]
  %s4 = inlined_call_operand.vmem [shape: f32[16,32], index: 4, kind: input, shape index: {}]
  %s5 = inlined_call_operand.vmem [shape: f32[32,32], index: 5, kind: input, shape index: {}]
  %s6 = inlined_call_operand.vmem [shape: f32[1,32], index: 6, kind: input, shape index: {}]
  %s7 = inlined_call_operand.vmem [shape: f32[32,32], index: 7, kind: input, shape index: {}]
  %s8 = inlined_call_operand.vmem [shape: f32[1,32], index: 8, kind: input, shape index: {}]
  %s9 = inlined_call_operand.vmem [shape: f32[32,32], index: 9, kind: input, shape index: {}]
  %s10 = inlined_call_operand.vmem [shape: f32[1,32], index: 10, kind: input, shape index: {}]
  %s11 = inlined_call_operand.vmem [shape: f32[128,16], index: 11, kind: input, shape index: {}]
  %s12 = inlined_call_operand.vmem [shape: f32[128,32], index: 12, kind: input, shape index: {}]
  %s13 = inlined_call_operand.vmem [shape: f32[16,128], index: 13, kind: input, shape index: {}]
  %s14 = inlined_call_operand.vmem [shape: f32[128,128], index: 14, kind: input, shape index: {}]
  %s15 = inlined_call_operand.vmem [shape: f32[32,32], index: 15, kind: input, shape index: {}]
  %s16 = inlined_call_operand.vmem [shape: f32[1,32], index: 16, kind: input, shape index: {}]
  %s17 = inlined_call_operand.vmem [shape: f32[1,32], index: 17, kind: input, shape index: {}]
  %s18 = inlined_call_operand.vmem [shape: f32[1,32], index: 18, kind: input, shape index: {}]
  %s19 = inlined_call_operand.vmem [shape: f32[32,256], index: 19, kind: input, shape index: {}]
  %s20 = inlined_call_operand.vmem [shape: f32[16,256], index: 20, kind: input, shape index: {}]
  %s21 = inlined_call_operand.vmem [shape: f32[2,16], index: 21, kind: input, shape index: {}]
  %s22 = inlined_call_operand.hbm [shape: f32[2,256], index: 22, kind: output, shape index: {}]
  %s23 = sld [smem:[#allocation0]]
  $region98: #{tpu_custom_call.1} parent=0
    _
  %s25 = ssub.s32 1, %s23
  %s26 = scalar_select 0, %s25, %s23
  $region1: #{tpu_custom_call.1} parent=0
    #allocation2 [shape = 'u8[2048]{0}', space=vmem, size = 0x800, scoped, tag = 'output window, operand 0, single buffered']
    #allocation3 [shape = 's32[1]{0}', space=sflag, size = 0x4, scoped, tag = 'scoped memory for tpu_custom_call.1']
    %27 = vsyncpa [#allocation3], 0
    // Predicated region
    $region2: #{tpu_custom_call.1} parent=1 // pred_check
      _
    $region3: #{tpu_custom_call.1} parent=1 // pred_check_branch
      %29 = sbr.rel (0) target = $region5
    $region4: #{tpu_custom_call.1} parent=1 // pred_region
      _
    $region5: #{tpu_custom_call.1} parent=1 // pred_fallthru
      _
    // Predicated region
    $region6: #{tpu_custom_call.1} parent=1 // pred_check
      _
    $region7: #{tpu_custom_call.1} parent=1 // pred_check_branch
      %31 = sbr.rel (0) target = $region9
    $region8: #{tpu_custom_call.1} parent=1 // pred_region
      _
    $region9: #{tpu_custom_call.1} parent=1 // pred_fallthru
      _
    // Predicated region
    $region10: #{tpu_custom_call.1} parent=1 // pred_check
      _
    $region11: #{tpu_custom_call.1} parent=1 // pred_check_branch
      %33 = sbr.rel (0) target = $region13
    $region12: #{tpu_custom_call.1} parent=1 // pred_region
      _
    $region13: #{tpu_custom_call.1} parent=1 // pred_fallthru
      _
    // Predicated region
    $region14: #{tpu_custom_call.1} parent=1 // pred_check
      _
    $region15: #{tpu_custom_call.1} parent=1 // pred_check_branch
      %35 = sbr.rel (0) target = $region17
    $region16: #{tpu_custom_call.1} parent=1 // pred_region
      _
    $region17: #{tpu_custom_call.1} parent=1 // pred_fallthru
      _
    // Predicated region
    $region18: #{tpu_custom_call.1} parent=1 // pred_check
      _
    $region19: #{tpu_custom_call.1} parent=1 // pred_check_branch
      %37 = sbr.rel (0) target = $region21
    $region20: #{tpu_custom_call.1} parent=1 // pred_region
      _
    $region21: #{tpu_custom_call.1} parent=1 // pred_fallthru
      _
    // Predicated region
    $region22: #{tpu_custom_call.1} parent=1 // pred_check
      _
    $region23: #{tpu_custom_call.1} parent=1 // pred_check_branch
      %39 = sbr.rel (0) target = $region25
    $region24: #{tpu_custom_call.1} parent=1 // pred_region
      _
    $region25: #{tpu_custom_call.1} parent=1 // pred_fallthru
      _
    // Predicated region
    $region26: #{tpu_custom_call.1} parent=1 // pred_check
      _
    $region27: #{tpu_custom_call.1} parent=1 // pred_check_branch
      %41 = sbr.rel (0) target = $region29
    $region28: #{tpu_custom_call.1} parent=1 // pred_region
      _
    $region29: #{tpu_custom_call.1} parent=1 // pred_fallthru
      _
    // Predicated region
    $region30: #{tpu_custom_call.1} parent=1 // pred_check
      _
    $region31: #{tpu_custom_call.1} parent=1 // pred_check_branch
      %43 = sbr.rel (0) target = $region33
    $region32: #{tpu_custom_call.1} parent=1 // pred_region
      _
    $region33: #{tpu_custom_call.1} parent=1 // pred_fallthru
      _
    // Predicated region
    $region34: #{tpu_custom_call.1} parent=1 // pred_check
      _
    $region35: #{tpu_custom_call.1} parent=1 // pred_check_branch
      %45 = sbr.rel (0) target = $region37
    $region36: #{tpu_custom_call.1} parent=1 // pred_region
      _
    $region37: #{tpu_custom_call.1} parent=1 // pred_fallthru
      _
    // Predicated region
    $region38: #{tpu_custom_call.1} parent=1 // pred_check
      _
    $region39: #{tpu_custom_call.1} parent=1 // pred_check_branch
      %47 = sbr.rel (0) target = $region41
    $region40: #{tpu_custom_call.1} parent=1 // pred_region
      _
    $region41: #{tpu_custom_call.1} parent=1 // pred_fallthru
      _
    // Predicated region
    $region42: #{tpu_custom_call.1} parent=1 // pred_check
      _
    $region43: #{tpu_custom_call.1} parent=1 // pred_check_branch
      %49 = sbr.rel (0) target = $region45
    $region44: #{tpu_custom_call.1} parent=1 // pred_region
      _
    $region45: #{tpu_custom_call.1} parent=1 // pred_fallthru
      _
    // Predicated region
    $region46: #{tpu_custom_call.1} parent=1 // pred_check
      _
    $region47: #{tpu_custom_call.1} parent=1 // pred_check_branch
      %51 = sbr.rel (0) target = $region49
    $region48: #{tpu_custom_call.1} parent=1 // pred_region
      _
    $region49: #{tpu_custom_call.1} parent=1 // pred_fallthru
      _
    // Predicated region
    $region50: #{tpu_custom_call.1} parent=1 // pred_check
      _
    $region51: #{tpu_custom_call.1} parent=1 // pred_check_branch
      %53 = sbr.rel (0) target = $region53
    $region52: #{tpu_custom_call.1} parent=1 // pred_region
      _
    $region53: #{tpu_custom_call.1} parent=1 // pred_fallthru
      _
    // Predicated region
    $region54: #{tpu_custom_call.1} parent=1 // pred_check
      _
    $region55: #{tpu_custom_call.1} parent=1 // pred_check_branch
      %55 = sbr.rel (0) target = $region57
    $region56: #{tpu_custom_call.1} parent=1 // pred_region
      _
    $region57: #{tpu_custom_call.1} parent=1 // pred_fallthru
      _
    // Predicated region
    $region58: #{tpu_custom_call.1} parent=1 // pred_check
      _
    $region59: #{tpu_custom_call.1} parent=1 // pred_check_branch
      %57 = sbr.rel (0) target = $region61
    $region60: #{tpu_custom_call.1} parent=1 // pred_region
      _
    $region61: #{tpu_custom_call.1} parent=1 // pred_fallthru
      _
    // Predicated region
    $region62: #{tpu_custom_call.1} parent=1 // pred_check
      _
    $region63: #{tpu_custom_call.1} parent=1 // pred_check_branch
      %59 = sbr.rel (0) target = $region65
    $region64: #{tpu_custom_call.1} parent=1 // pred_region
      _
    $region65: #{tpu_custom_call.1} parent=1 // pred_fallthru
      _
    // Predicated region
    $region66: #{tpu_custom_call.1} parent=1 // pred_check
      _
    $region67: #{tpu_custom_call.1} parent=1 // pred_check_branch
      %61 = sbr.rel (0) target = $region69
    $region68: #{tpu_custom_call.1} parent=1 // pred_region
      _
    $region69: #{tpu_custom_call.1} parent=1 // pred_fallthru
      _
    // Predicated region
    $region70: #{tpu_custom_call.1} parent=1 // pred_check
      _
    $region71: #{tpu_custom_call.1} parent=1 // pred_check_branch
      %63 = sbr.rel (0) target = $region73
    $region72: #{tpu_custom_call.1} parent=1 // pred_region
      _
    $region73: #{tpu_custom_call.1} parent=1 // pred_fallthru
      _
    // Predicated region
    $region74: #{tpu_custom_call.1} parent=1 // pred_check
      _
    $region75: #{tpu_custom_call.1} parent=1 // pred_check_branch
      %65 = sbr.rel (0) target = $region77
    $region76: #{tpu_custom_call.1} parent=1 // pred_region
      _
    $region77: #{tpu_custom_call.1} parent=1 // pred_fallthru
      _
    // Predicated region
    $region78: #{tpu_custom_call.1} parent=1 // pred_check
      _
    $region79: #{tpu_custom_call.1} parent=1 // pred_check_branch
      %67 = sbr.rel (0) target = $region81
    $region80: #{tpu_custom_call.1} parent=1 // pred_region
      _
    $region81: #{tpu_custom_call.1} parent=1 // pred_fallthru
      _
    // Predicated region
    $region82: #{tpu_custom_call.1} parent=1 // pred_check
      _
    $region83: #{tpu_custom_call.1} parent=1 // pred_check_branch
      %69 = sbr.rel (0) target = $region85
    $region84: #{tpu_custom_call.1} parent=1 // pred_region
      _
    $region85: #{tpu_custom_call.1} parent=1 // pred_fallthru
      _
    // Predicated region
    $region86: #{tpu_custom_call.1} parent=1 // pred_check
      _
    $region87: #{tpu_custom_call.1} parent=1 // pred_check_branch
      %71 = sbr.rel (0) target = $region89
    $region88: #{tpu_custom_call.1} parent=1 // pred_region
      _
    $region89: #{tpu_custom_call.1} parent=1 // pred_fallthru
      _
    %v72 = vld [vmem:[%s0] sm:$0x1]
    %v73 = vperm.slane %v72, 0
    %v74 = vld [vmem:[%s0 + $0x1] sm:$0x1]
    %v75 = vperm.slane %v74, 0
    %v76 = vld [vmem:[%s1] sm:$0xff]
    %v77 = vld [vmem:[%s1 + $0x8] sm:$0xff]
    %v78 = vld [vmem:[%s1 + $0x10] sm:$0xff]
    %v79 = vld [vmem:[%s1 + $0x18] sm:$0xff]
    %v80 = vld [vmem:[%s1 + $0x20] sm:$0xff]
    %v81 = vld [vmem:[%s1 + $0x28] sm:$0xff]
    %v82 = vld [vmem:[%s1 + $0x30] sm:$0xff]
    %v83 = vld [vmem:[%s1 + $0x38] sm:$0xff]
    %vm84 = vcmask 261120
    %v86 = vsel %vm84, %v73, 0
    %v89 = vsel %vm84, %v75, 0
    %91 = vmatpush.msra.mxu0 0.0
    %92 = vmatpush.msra.mxu0 0.0
    %93 = vmatpush.msra.mxu0 0.0
    %94 = vmatpush.msra.mxu0 0.0
    %95 = vmatpush.msra.mxu0 0.0
    %96 = vmatpush.msra.mxu0 0.0
    %97 = vmatpush.msra.mxu0 0.0
    %98 = vmatpush.msra.mxu0 0.0
    %99 = vmatpush.msra.mxu0 0.0
    %100 = vmatpush.msra.mxu0 0.0
    %101 = vmatpush.msra.mxu0 0.0
    %102 = vmatpush.msra.mxu0 0.0
    %103 = vmatpush.msra.mxu0 %v82
    %104 = vmatpush.msra.mxu0 %v80
    %105 = vmatpush.msra.mxu0 %v78
    %106 = vmatpush.msra.mxu0 %v76
    %107 = vmatmul.f32.gmra.mxu0 %v86
    %v108 = vpop.f32.mrf.mxu0
    %v109 = vadd.f32 0.0, %v108
    %110 = vmatmul.f32.gmra.mxu0 %v89
    %v111 = vpop.f32.mrf.mxu0
    %v112 = vadd.f32 0.0, %v111
    %113 = vdwg.mxu0
    %114 = vmatpush.msra.mxu0 0.0
    %115 = vmatpush.msra.mxu0 0.0
    %116 = vmatpush.msra.mxu0 0.0
    %117 = vmatpush.msra.mxu0 0.0
    %118 = vmatpush.msra.mxu0 0.0
    %119 = vmatpush.msra.mxu0 0.0
    %120 = vmatpush.msra.mxu0 0.0
    %121 = vmatpush.msra.mxu0 0.0
    %122 = vmatpush.msra.mxu0 0.0
    %123 = vmatpush.msra.mxu0 0.0
    %124 = vmatpush.msra.mxu0 0.0
    %125 = vmatpush.msra.mxu0 0.0
    %126 = vmatpush.msra.mxu0 %v83
    %127 = vmatpush.msra.mxu0 %v81
    %128 = vmatpush.msra.mxu0 %v79
    %129 = vmatpush.msra.mxu0 %v77
    %130 = vmatmul.f32.gmra.mxu0 %v86
    %v131 = vpop.f32.mrf.mxu0
    %v132 = vadd.f32 0.0, %v131
    %133 = vmatmul.f32.gmra.mxu0 %v89
    %v134 = vpop.f32.mrf.mxu0
    %v135 = vadd.f32 0.0, %v134
    %136 = vdwg.mxu0
    %v137 = vld [vmem:[%s2] sm:$0xff]
    %v138 = vld [vmem:[%s2 + $0x8] sm:$0xff]
    %v139 = vld [vmem:[%s2 + $0x10] sm:$0xff]
    %v140 = vld [vmem:[%s2 + $0x18] sm:$0xff]
    %v141 = vmul.f32 %v109, %v137
    %v142 = vmul.f32 %v132, %v138
    %v143 = vmul.f32 %v112, %v139
    %v144 = vmul.f32 %v135, %v140
    %v145 = vld [vmem:[%s3] sm:$0xff]
    %v146 = vld [vmem:[%s3 + $0x8] sm:$0xff]
    %v147 = vld [vmem:[%s3 + $0x10] sm:$0xff]
    %v148 = vld [vmem:[%s3 + $0x18] sm:$0xff]
    %v149 = vld [vmem:[%s3 + $0x20] sm:$0xff]
    %v150 = vld [vmem:[%s3 + $0x28] sm:$0xff]
    %v151 = vld [vmem:[%s3 + $0x30] sm:$0xff]
    %v152 = vld [vmem:[%s3 + $0x38] sm:$0xff]
    %v153 = vld [vmem:[%s3 + $0x40] sm:$0xff]
    %v154 = vld [vmem:[%s3 + $0x48] sm:$0xff]
    %v155 = vld [vmem:[%s3 + $0x50] sm:$0xff]
    %v156 = vld [vmem:[%s3 + $0x58] sm:$0xff]
    %v157 = vld [vmem:[%s3 + $0x60] sm:$0xff]
    %v158 = vld [vmem:[%s3 + $0x68] sm:$0xff]
    %v159 = vld [vmem:[%s3 + $0x70] sm:$0xff]
    %v160 = vld [vmem:[%s3 + $0x78] sm:$0xff]
    %v161 = vld [vmem:[%s3 + $0x80] sm:$0xff]
    %v162 = vld [vmem:[%s3 + $0x88] sm:$0xff]
    %v163 = vld [vmem:[%s3 + $0x90] sm:$0xff]
    %v164 = vld [vmem:[%s3 + $0x98] sm:$0xff]
    %v165 = vld [vmem:[%s3 + $0xa0] sm:$0xff]
    %v166 = vld [vmem:[%s3 + $0xa8] sm:$0xff]
    %v167 = vld [vmem:[%s3 + $0xb0] sm:$0xff]
    %v168 = vld [vmem:[%s3 + $0xb8] sm:$0xff]
    %v169 = vld [vmem:[%s3 + $0xc0] sm:$0xff]
    %v170 = vld [vmem:[%s3 + $0xc8] sm:$0xff]
    %v171 = vld [vmem:[%s3 + $0xd0] sm:$0xff]
    %v172 = vld [vmem:[%s3 + $0xd8] sm:$0xff]
    %v173 = vld [vmem:[%s3 + $0xe0] sm:$0xff]
    %v174 = vld [vmem:[%s3 + $0xe8] sm:$0xff]
    %v175 = vld [vmem:[%s3 + $0xf0] sm:$0xff]
    %v176 = vld [vmem:[%s3 + $0xf8] sm:$0xff]
    %v177 = vld [vmem:[%s4] sm:$0xff]
    %v178 = vld [vmem:[%s4 + $0x8] sm:$0xff]
    %179 = vmatpush.msra.mxu0 %v160
    %180 = vmatpush.msra.mxu0 %v159
    %181 = vmatpush.msra.mxu0 %v158
    %182 = vmatpush.msra.mxu0 %v157
    %183 = vmatpush.msra.mxu0 %v156
    %184 = vmatpush.msra.mxu0 %v155
    %185 = vmatpush.msra.mxu0 %v154
    %186 = vmatpush.msra.mxu0 %v153
    %187 = vmatpush.msra.mxu0 %v152
    %188 = vmatpush.msra.mxu0 %v151
    %189 = vmatpush.msra.mxu0 %v150
    %190 = vmatpush.msra.mxu0 %v149
    %191 = vmatpush.msra.mxu0 %v148
    %192 = vmatpush.msra.mxu0 %v147
    %193 = vmatpush.msra.mxu0 %v146
    %194 = vmatpush.msra.mxu0 %v145
    %195 = vmatmul.f32.gmra.mxu0 %v141
    %v196 = vpop.f32.mrf.mxu0
    %v197 = vadd.f32 %v177, %v196
    %198 = vmatmul.f32.gmra.mxu0 %v143
    %v199 = vpop.f32.mrf.mxu0
    %v200 = vadd.f32 %v178, %v199
    %201 = vdwg.mxu0
    %202 = vmatpush.msra.mxu0 %v176
    %203 = vmatpush.msra.mxu0 %v175
    %204 = vmatpush.msra.mxu0 %v174
    %205 = vmatpush.msra.mxu0 %v173
    %206 = vmatpush.msra.mxu0 %v172
    %207 = vmatpush.msra.mxu0 %v171
    %208 = vmatpush.msra.mxu0 %v170
    %209 = vmatpush.msra.mxu0 %v169
    %210 = vmatpush.msra.mxu0 %v168
    %211 = vmatpush.msra.mxu0 %v167
    %212 = vmatpush.msra.mxu0 %v166
    %213 = vmatpush.msra.mxu0 %v165
    %214 = vmatpush.msra.mxu0 %v164
    %215 = vmatpush.msra.mxu0 %v163
    %216 = vmatpush.msra.mxu0 %v162
    %217 = vmatpush.msra.mxu0 %v161
    %218 = vmatmul.f32.gmra.mxu0 %v142
    %v219 = vpop.f32.mrf.mxu0
    %v220 = vadd.f32 %v197, %v219
    %221 = vmatmul.f32.gmra.mxu0 %v144
    %v222 = vpop.f32.mrf.mxu0
    %v223 = vadd.f32 %v200, %v222
    %224 = vdwg.mxu0
    %v225 = vxor.u32 %v220, 2147483648
    %v226 = vxor.u32 %v223, 2147483648
    %v227 = vmul.f32 %v225, 1.442695
    %v228 = vpow.pop %v227
    %v229 = vmul.f32 %v226, 1.442695
    %v230 = vpow.pop %v229
    %v231 = vadd.f32 %v228, 1.0
    %v232 = vadd.f32 %v230, 1.0
    %v233 = vrcp.pop %v231
    %v234 = vmul.f32 %v231, %v233
    %v235 = vsub.f32 1.0, %v234
    %v236 = vmul.f32 %v233, %v235
    %v237 = vadd.f32 %v233, %v236
    %vm238 = vweird.f32 %v231
    %vm239 = vweird.f32 %v233
    %vm240 = vmor %vm238, %vm239
    %v241 = vsel %vm240, %v233, %v237
    %v242 = vand.u32 2147483647, %v231
    %vm243 = vcmp.eq.f32.partialorder %v242, 8.507059e+37
    %v244 = vand.u32 %v231, 2147483648
    %v245 = vor.u32 1.1754944e-38, %v244
    %v246 = vsel %vm243, %v245, %v241
    %v247 = vmul.f32 1.0, %v246
    %v248 = vrcp.pop %v232
    %v249 = vmul.f32 %v232, %v248
    %v250 = vsub.f32 1.0, %v249
    %v251 = vmul.f32 %v248, %v250
    %v252 = vadd.f32 %v248, %v251
    %vm253 = vweird.f32 %v232
    %vm254 = vweird.f32 %v248
    %vm255 = vmor %vm253, %vm254
    %v256 = vsel %vm255, %v248, %v252
    %v257 = vand.u32 2147483647, %v232
    %vm258 = vcmp.eq.f32.partialorder %v257, 8.507059e+37
    %v259 = vand.u32 %v232, 2147483648
    %v260 = vor.u32 1.1754944e-38, %v259
    %v261 = vsel %vm258, %v260, %v256
    %v262 = vmul.f32 1.0, %v261
    %v263 = vmul.f32 %v220, %v247
    %v264 = vmul.f32 %v223, %v262
    %v265 = vld [vmem:[%s5] sm:$0xff]
    %v266 = vld [vmem:[%s5 + $0x8] sm:$0xff]
    %v267 = vld [vmem:[%s5 + $0x10] sm:$0xff]
    %v268 = vld [vmem:[%s5 + $0x18] sm:$0xff]
    %v269 = vld [vmem:[%s6] sm:$0x1]
    %v271 = vperm.slane %v269, 0
    %v274 = vsel %vm84, %v263, 0
    %v277 = vsel %vm84, %v264, 0
    %279 = vmatpush.msra.mxu0 0.0
    %280 = vmatpush.msra.mxu0 0.0
    %281 = vmatpush.msra.mxu0 0.0
    %282 = vmatpush.msra.mxu0 0.0
    %283 = vmatpush.msra.mxu0 0.0
    %284 = vmatpush.msra.mxu0 0.0
    %285 = vmatpush.msra.mxu0 0.0
    %286 = vmatpush.msra.mxu0 0.0
    %287 = vmatpush.msra.mxu0 0.0
    %288 = vmatpush.msra.mxu0 0.0
    %289 = vmatpush.msra.mxu0 0.0
    %290 = vmatpush.msra.mxu0 0.0
    %291 = vmatpush.msra.mxu0 %v268
    %292 = vmatpush.msra.mxu0 %v267
    %293 = vmatpush.msra.mxu0 %v266
    %294 = vmatpush.msra.mxu0 %v265
    %295 = vmatmul.f32.gmra.mxu0 %v274
    %v296 = vpop.f32.mrf.mxu0
    %v297 = vadd.f32 %v271, %v296
    %298 = vmatmul.f32.gmra.mxu0 %v277
    %v299 = vpop.f32.mrf.mxu0
    %v300 = vadd.f32 %v271, %v299
    %301 = vdwg.mxu0
    %v302 = vld [vmem:[%s11] sm:$0xff]
    %v303 = vld [vmem:[%s11 + $0x8] sm:$0xff]
    %v304 = vld [vmem:[%s11 + $0x10] sm:$0xff]
    %v305 = vld [vmem:[%s11 + $0x18] sm:$0xff]
    %v306 = vld [vmem:[%s11 + $0x20] sm:$0xff]
    %v307 = vld [vmem:[%s11 + $0x28] sm:$0xff]
    %v308 = vld [vmem:[%s11 + $0x30] sm:$0xff]
    %v309 = vld [vmem:[%s11 + $0x38] sm:$0xff]
    %v310 = vld [vmem:[%s11 + $0x40] sm:$0xff]
    %v311 = vld [vmem:[%s11 + $0x48] sm:$0xff]
    %v312 = vld [vmem:[%s11 + $0x50] sm:$0xff]
    %v313 = vld [vmem:[%s11 + $0x58] sm:$0xff]
    %v314 = vld [vmem:[%s11 + $0x60] sm:$0xff]
    %v315 = vld [vmem:[%s11 + $0x68] sm:$0xff]
    %v316 = vld [vmem:[%s11 + $0x70] sm:$0xff]
    %v317 = vld [vmem:[%s11 + $0x78] sm:$0xff]
    %vm318 = vcmask 130048
    %v320 = vsel %vm318, %v302, 0
    %v323 = vsel %vm318, %v303, 0
    %v326 = vsel %vm318, %v304, 0
    %v329 = vsel %vm318, %v305, 0
    %v332 = vsel %vm318, %v306, 0
    %v335 = vsel %vm318, %v307, 0
    %v338 = vsel %vm318, %v308, 0
    %v341 = vsel %vm318, %v309, 0
    %v344 = vsel %vm318, %v310, 0
    %v347 = vsel %vm318, %v311, 0
    %v350 = vsel %vm318, %v312, 0
    %v353 = vsel %vm318, %v313, 0
    %v356 = vsel %vm318, %v314, 0
    %v359 = vsel %vm318, %v315, 0
    %v362 = vsel %vm318, %v316, 0
    %v365 = vsel %vm318, %v317, 0
    %367 = vmatpush.msra.mxu0 0.0
    %368 = vmatpush.msra.mxu0 0.0
    %369 = vmatpush.msra.mxu0 0.0
    %370 = vmatpush.msra.mxu0 0.0
    %371 = vmatpush.msra.mxu0 0.0
    %372 = vmatpush.msra.mxu0 0.0
    %373 = vmatpush.msra.mxu0 0.0
    %374 = vmatpush.msra.mxu0 0.0
    %375 = vmatpush.msra.mxu0 0.0
    %376 = vmatpush.msra.mxu0 0.0
    %377 = vmatpush.msra.mxu0 0.0
    %378 = vmatpush.msra.mxu0 0.0
    %379 = vmatpush.msra.mxu0 0.0
    %380 = vmatpush.msra.mxu0 0.0
    %381 = vmatpush.msra.mxu0 %v264
    %382 = vmatpush.msra.mxu0 %v263
    %383 = vmatmul.f32.gmra.mxu0 %v320
    %v384 = vpop.f32.mrf.mxu0
    %v385 = vadd.f32 0.0, %v384
    %386 = vmatmul.f32.gmra.mxu0 %v323
    %v387 = vpop.f32.mrf.mxu0
    %v388 = vadd.f32 0.0, %v387
    %389 = vmatmul.f32.gmra.mxu0 %v326
    %v390 = vpop.f32.mrf.mxu0
    %v391 = vadd.f32 0.0, %v390
    %392 = vmatmul.f32.gmra.mxu0 %v329
    %v393 = vpop.f32.mrf.mxu0
    %v394 = vadd.f32 0.0, %v393
    %395 = vmatmul.f32.gmra.mxu0 %v332
    %v396 = vpop.f32.mrf.mxu0
    %v397 = vadd.f32 0.0, %v396
    %398 = vmatmul.f32.gmra.mxu0 %v335
    %v399 = vpop.f32.mrf.mxu0
    %v400 = vadd.f32 0.0, %v399
    %401 = vmatmul.f32.gmra.mxu0 %v338
    %v402 = vpop.f32.mrf.mxu0
    %v403 = vadd.f32 0.0, %v402
    %404 = vmatmul.f32.gmra.mxu0 %v341
    %v405 = vpop.f32.mrf.mxu0
    %v406 = vadd.f32 0.0, %v405
    %407 = vmatmul.f32.gmra.mxu0 %v344
    %v408 = vpop.f32.mrf.mxu0
    %v409 = vadd.f32 0.0, %v408
    %410 = vmatmul.f32.gmra.mxu0 %v347
    %v411 = vpop.f32.mrf.mxu0
    %v412 = vadd.f32 0.0, %v411
    %413 = vmatmul.f32.gmra.mxu0 %v350
    %v414 = vpop.f32.mrf.mxu0
    %v415 = vadd.f32 0.0, %v414
    %416 = vmatmul.f32.gmra.mxu0 %v353
    %v417 = vpop.f32.mrf.mxu0
    %v418 = vadd.f32 0.0, %v417
    %419 = vmatmul.f32.gmra.mxu0 %v356
    %v420 = vpop.f32.mrf.mxu0
    %v421 = vadd.f32 0.0, %v420
    %422 = vmatmul.f32.gmra.mxu0 %v359
    %v423 = vpop.f32.mrf.mxu0
    %v424 = vadd.f32 0.0, %v423
    %425 = vmatmul.f32.gmra.mxu0 %v362
    %v426 = vpop.f32.mrf.mxu0
    %v427 = vadd.f32 0.0, %v426
    %428 = vmatmul.f32.gmra.mxu0 %v365
    %v429 = vpop.f32.mrf.mxu0
    %v430 = vadd.f32 0.0, %v429
    %431 = vdwg.mxu0
    %v432 = vld [vmem:[%s7] sm:$0xff]
    %v433 = vld [vmem:[%s7 + $0x8] sm:$0xff]
    %v434 = vld [vmem:[%s7 + $0x10] sm:$0xff]
    %v435 = vld [vmem:[%s7 + $0x18] sm:$0xff]
    %v436 = vld [vmem:[%s8] sm:$0x1]
    %v438 = vperm.slane %v436, 0
    %v441 = vsel %vm84, %v385, 0
    %v444 = vsel %vm84, %v388, 0
    %v447 = vsel %vm84, %v391, 0
    %v450 = vsel %vm84, %v394, 0
    %v453 = vsel %vm84, %v397, 0
    %v456 = vsel %vm84, %v400, 0
    %v459 = vsel %vm84, %v403, 0
    %v462 = vsel %vm84, %v406, 0
    %v465 = vsel %vm84, %v409, 0
    %v468 = vsel %vm84, %v412, 0
    %v471 = vsel %vm84, %v415, 0
    %v474 = vsel %vm84, %v418, 0
    %v477 = vsel %vm84, %v421, 0
    %v480 = vsel %vm84, %v424, 0
    %v483 = vsel %vm84, %v427, 0
    %v486 = vsel %vm84, %v430, 0
    %488 = vmatpush.msra.mxu0 0.0
    %489 = vmatpush.msra.mxu0 0.0
    %490 = vmatpush.msra.mxu0 0.0
    %491 = vmatpush.msra.mxu0 0.0
    %492 = vmatpush.msra.mxu0 0.0
    %493 = vmatpush.msra.mxu0 0.0
    %494 = vmatpush.msra.mxu0 0.0
    %495 = vmatpush.msra.mxu0 0.0
    %496 = vmatpush.msra.mxu0 0.0
    %497 = vmatpush.msra.mxu0 0.0
    %498 = vmatpush.msra.mxu0 0.0
    %499 = vmatpush.msra.mxu0 0.0
    %500 = vmatpush.msra.mxu0 %v435
    %501 = vmatpush.msra.mxu0 %v434
    %502 = vmatpush.msra.mxu0 %v433
    %503 = vmatpush.msra.mxu0 %v432
    %504 = vmatmul.f32.gmra.mxu0 %v441
    %v505 = vpop.f32.mrf.mxu0
    %v506 = vadd.f32 %v438, %v505
    %507 = vmatmul.f32.gmra.mxu0 %v444
    %v508 = vpop.f32.mrf.mxu0
    %v509 = vadd.f32 %v438, %v508
    %510 = vmatmul.f32.gmra.mxu0 %v447
    %v511 = vpop.f32.mrf.mxu0
    %v512 = vadd.f32 %v438, %v511
    %513 = vmatmul.f32.gmra.mxu0 %v450
    %v514 = vpop.f32.mrf.mxu0
    %v515 = vadd.f32 %v438, %v514
    %516 = vmatmul.f32.gmra.mxu0 %v453
    %v517 = vpop.f32.mrf.mxu0
    %v518 = vadd.f32 %v438, %v517
    %519 = vmatmul.f32.gmra.mxu0 %v456
    %v520 = vpop.f32.mrf.mxu0
    %v521 = vadd.f32 %v438, %v520
    %522 = vmatmul.f32.gmra.mxu0 %v459
    %v523 = vpop.f32.mrf.mxu0
    %v524 = vadd.f32 %v438, %v523
    %525 = vmatmul.f32.gmra.mxu0 %v462
    %v526 = vpop.f32.mrf.mxu0
    %v527 = vadd.f32 %v438, %v526
    %528 = vmatmul.f32.gmra.mxu0 %v465
    %v529 = vpop.f32.mrf.mxu0
    %v530 = vadd.f32 %v438, %v529
    %531 = vmatmul.f32.gmra.mxu0 %v468
    %v532 = vpop.f32.mrf.mxu0
    %v533 = vadd.f32 %v438, %v532
    %534 = vmatmul.f32.gmra.mxu0 %v471
    %v535 = vpop.f32.mrf.mxu0
    %v536 = vadd.f32 %v438, %v535
    %537 = vmatmul.f32.gmra.mxu0 %v474
    %v538 = vpop.f32.mrf.mxu0
    %v539 = vadd.f32 %v438, %v538
    %540 = vmatmul.f32.gmra.mxu0 %v477
    %v541 = vpop.f32.mrf.mxu0
    %v542 = vadd.f32 %v438, %v541
    %543 = vmatmul.f32.gmra.mxu0 %v480
    %v544 = vpop.f32.mrf.mxu0
    %v545 = vadd.f32 %v438, %v544
    %546 = vmatmul.f32.gmra.mxu0 %v483
    %v547 = vpop.f32.mrf.mxu0
    %v548 = vadd.f32 %v438, %v547
    %549 = vmatmul.f32.gmra.mxu0 %v486
    %v550 = vpop.f32.mrf.mxu0
    %v551 = vadd.f32 %v438, %v550
    %552 = vdwg.mxu0
    %v553 = vld [vmem:[%s12] sm:$0xff]
    %v554 = vld [vmem:[%s12 + $0x8] sm:$0xff]
    %v555 = vld [vmem:[%s12 + $0x10] sm:$0xff]
    %v556 = vld [vmem:[%s12 + $0x18] sm:$0xff]
    %v557 = vld [vmem:[%s12 + $0x20] sm:$0xff]
    %v558 = vld [vmem:[%s12 + $0x28] sm:$0xff]
    %v559 = vld [vmem:[%s12 + $0x30] sm:$0xff]
    %v560 = vld [vmem:[%s12 + $0x38] sm:$0xff]
    %v561 = vld [vmem:[%s12 + $0x40] sm:$0xff]
    %v562 = vld [vmem:[%s12 + $0x48] sm:$0xff]
    %v563 = vld [vmem:[%s12 + $0x50] sm:$0xff]
    %v564 = vld [vmem:[%s12 + $0x58] sm:$0xff]
    %v565 = vld [vmem:[%s12 + $0x60] sm:$0xff]
    %v566 = vld [vmem:[%s12 + $0x68] sm:$0xff]
    %v567 = vld [vmem:[%s12 + $0x70] sm:$0xff]
    %v568 = vld [vmem:[%s12 + $0x78] sm:$0xff]
    %v569 = vmul.f32 %v506, %v553
    %v570 = vmul.f32 %v509, %v554
    %v571 = vmul.f32 %v512, %v555
    %v572 = vmul.f32 %v515, %v556
    %v573 = vmul.f32 %v518, %v557
    %v574 = vmul.f32 %v521, %v558
    %v575 = vmul.f32 %v524, %v559
    %v576 = vmul.f32 %v527, %v560
    %v577 = vmul.f32 %v530, %v561
    %v578 = vmul.f32 %v533, %v562
    %v579 = vmul.f32 %v536, %v563
    %v580 = vmul.f32 %v539, %v564
    %v581 = vmul.f32 %v542, %v565
    %v582 = vmul.f32 %v545, %v566
    %v583 = vmul.f32 %v548, %v567
    %v584 = vmul.f32 %v551, %v568
    %v585 = vld [vmem:[%s9] sm:$0xff]
    %v586 = vld [vmem:[%s9 + $0x8] sm:$0xff]
    %v587 = vld [vmem:[%s9 + $0x10] sm:$0xff]
    %v588 = vld [vmem:[%s9 + $0x18] sm:$0xff]
    %v589 = vld [vmem:[%s10] sm:$0x1]
    %v591 = vperm.slane %v589, 0
    %593 = vmatpush.msra.mxu0 0.0
    %594 = vmatpush.msra.mxu0 0.0
    %595 = vmatpush.msra.mxu0 0.0
    %596 = vmatpush.msra.mxu0 0.0
    %597 = vmatpush.msra.mxu0 0.0
    %598 = vmatpush.msra.mxu0 0.0
    %599 = vmatpush.msra.mxu0 0.0
    %600 = vmatpush.msra.mxu0 0.0
    %601 = vmatpush.msra.mxu0 0.0
    %602 = vmatpush.msra.mxu0 0.0
    %603 = vmatpush.msra.mxu0 0.0
    %604 = vmatpush.msra.mxu0 0.0
    %605 = vmatpush.msra.mxu0 %v588
    %606 = vmatpush.msra.mxu0 %v587
    %607 = vmatpush.msra.mxu0 %v586
    %608 = vmatpush.msra.mxu0 %v585
    %609 = vmatmul.f32.gmra.mxu0 %v441
    %v610 = vpop.f32.mrf.mxu0
    %v611 = vadd.f32 %v591, %v610
    %612 = vmatmul.f32.gmra.mxu0 %v444
    %v613 = vpop.f32.mrf.mxu0
    %v614 = vadd.f32 %v591, %v613
    %615 = vmatmul.f32.gmra.mxu0 %v447
    %v616 = vpop.f32.mrf.mxu0
    %v617 = vadd.f32 %v591, %v616
    %618 = vmatmul.f32.gmra.mxu0 %v450
    %v619 = vpop.f32.mrf.mxu0
    %v620 = vadd.f32 %v591, %v619
    %621 = vmatmul.f32.gmra.mxu0 %v453
    %v622 = vpop.f32.mrf.mxu0
    %v623 = vadd.f32 %v591, %v622
    %624 = vmatmul.f32.gmra.mxu0 %v456
    %v625 = vpop.f32.mrf.mxu0
    %v626 = vadd.f32 %v591, %v625
    %627 = vmatmul.f32.gmra.mxu0 %v459
    %v628 = vpop.f32.mrf.mxu0
    %v629 = vadd.f32 %v591, %v628
    %630 = vmatmul.f32.gmra.mxu0 %v462
    %v631 = vpop.f32.mrf.mxu0
    %v632 = vadd.f32 %v591, %v631
    %633 = vmatmul.f32.gmra.mxu0 %v465
    %v634 = vpop.f32.mrf.mxu0
    %v635 = vadd.f32 %v591, %v634
    %636 = vmatmul.f32.gmra.mxu0 %v468
    %v637 = vpop.f32.mrf.mxu0
    %v638 = vadd.f32 %v591, %v637
    %639 = vmatmul.f32.gmra.mxu0 %v471
    %v640 = vpop.f32.mrf.mxu0
    %v641 = vadd.f32 %v591, %v640
    %642 = vmatmul.f32.gmra.mxu0 %v474
    %v643 = vpop.f32.mrf.mxu0
    %v644 = vadd.f32 %v591, %v643
    %645 = vmatmul.f32.gmra.mxu0 %v477
    %v646 = vpop.f32.mrf.mxu0
    %v647 = vadd.f32 %v591, %v646
    %648 = vmatmul.f32.gmra.mxu0 %v480
    %v649 = vpop.f32.mrf.mxu0
    %v650 = vadd.f32 %v591, %v649
    %651 = vmatmul.f32.gmra.mxu0 %v483
    %v652 = vpop.f32.mrf.mxu0
    %v653 = vadd.f32 %v591, %v652
    %654 = vmatmul.f32.gmra.mxu0 %v486
    %v655 = vpop.f32.mrf.mxu0
    %v656 = vadd.f32 %v591, %v655
    %657 = vdwg.mxu0
    %v658 = vmul.f32 %v611, %v553
    %v659 = vmul.f32 %v614, %v554
    %v660 = vmul.f32 %v617, %v555
    %v661 = vmul.f32 %v620, %v556
    %v662 = vmul.f32 %v623, %v557
    %v663 = vmul.f32 %v626, %v558
    %v664 = vmul.f32 %v629, %v559
    %v665 = vmul.f32 %v632, %v560
    %v666 = vmul.f32 %v635, %v561
    %v667 = vmul.f32 %v638, %v562
    %v668 = vmul.f32 %v641, %v563
    %v669 = vmul.f32 %v644, %v564
    %v670 = vmul.f32 %v647, %v565
    %v671 = vmul.f32 %v650, %v566
    %v672 = vmul.f32 %v653, %v567
    %v673 = vmul.f32 %v656, %v568
    %v674 = vld [vmem:[%s13] sm:$0xff]
    %v675 = vld [vmem:[%s13 + $0x8] sm:$0xff]
    %v677 = vsel %vm84, %v297, 0
    %v680 = vsel %vm84, %v300, 0
    %v683 = vsel %vm84, %v569, 0
    %v686 = vsel %vm84, %v570, 0
    %v689 = vsel %vm84, %v571, 0
    %v692 = vsel %vm84, %v572, 0
    %v695 = vsel %vm84, %v573, 0
    %v698 = vsel %vm84, %v574, 0
    %v701 = vsel %vm84, %v575, 0
    %v704 = vsel %vm84, %v576, 0
    %v707 = vsel %vm84, %v577, 0
    %v710 = vsel %vm84, %v578, 0
    %v713 = vsel %vm84, %v579, 0
    %v716 = vsel %vm84, %v580, 0
    %v719 = vsel %vm84, %v581, 0
    %v722 = vsel %vm84, %v582, 0
    %v725 = vsel %vm84, %v583, 0
    %v728 = vsel %vm84, %v584, 0
    %730 = vmatpush.xpose.msra.mxu0 %v728
    %731 = vmatpush.xpose.msra.mxu0 %v725
    %732 = vmatpush.xpose.msra.mxu0 %v722
    %733 = vmatpush.xpose.msra.mxu0 %v719
    %734 = vmatpush.xpose.msra.mxu0 %v716
    %735 = vmatpush.xpose.msra.mxu0 %v713
    %736 = vmatpush.xpose.msra.mxu0 %v710
    %737 = vmatpush.xpose.msra.mxu0 %v707
    %738 = vmatpush.xpose.msra.mxu0 %v704
    %739 = vmatpush.xpose.msra.mxu0 %v701
    %740 = vmatpush.xpose.msra.mxu0 %v698
    %741 = vmatpush.xpose.msra.mxu0 %v695
    %742 = vmatpush.xpose.msra.mxu0 %v692
    %743 = vmatpush.xpose.msra.mxu0 %v689
    %744 = vmatpush.xpose.msra.mxu0 %v686
    %745 = vmatpush.xpose.msra.mxu0 %v683
    %746 = vmatmul.f32.gmra.mxu0 %v677
    %v747 = vpop.f32.mrf.mxu0
    %v748 = vadd.f32 %v674, %v747
    %749 = vmatmul.f32.gmra.mxu0 %v680
    %v750 = vpop.f32.mrf.mxu0
    %v751 = vadd.f32 %v675, %v750
    %752 = vdwg.mxu0
    %753 = vmax.xlane.f32.xlu0 %v748
    %v754 = vpop.xlane.xlu0 %753
    %755 = vmax.xlane.f32.xlu0 %v751
    %v756 = vpop.xlane.xlu0 %755
    %v757 = vsub.f32 %v748, %v754
    %v758 = vsub.f32 %v751, %v756
    %v759 = vmul.f32 %v757, 1.442695
    %v760 = vpow.pop %v759
    %v761 = vmul.f32 %v758, 1.442695
    %v762 = vpow.pop %v761
    %v763 = vld [vmem:[%s14] sm:$0xff]
    %v764 = vld [vmem:[%s14 + $0x8] sm:$0xff]
    %v765 = vld [vmem:[%s14 + $0x10] sm:$0xff]
    %v766 = vld [vmem:[%s14 + $0x18] sm:$0xff]
    %v767 = vld [vmem:[%s14 + $0x20] sm:$0xff]
    %v768 = vld [vmem:[%s14 + $0x28] sm:$0xff]
    %v769 = vld [vmem:[%s14 + $0x30] sm:$0xff]
    %v770 = vld [vmem:[%s14 + $0x38] sm:$0xff]
    %v771 = vld [vmem:[%s14 + $0x40] sm:$0xff]
    %v772 = vld [vmem:[%s14 + $0x48] sm:$0xff]
    %v773 = vld [vmem:[%s14 + $0x50] sm:$0xff]
    %v774 = vld [vmem:[%s14 + $0x58] sm:$0xff]
    %v775 = vld [vmem:[%s14 + $0x60] sm:$0xff]
    %v776 = vld [vmem:[%s14 + $0x68] sm:$0xff]
    %v777 = vld [vmem:[%s14 + $0x70] sm:$0xff]
    %v778 = vld [vmem:[%s14 + $0x78] sm:$0xff]
    %779 = vmatpush.msra.mxu0 %v778
    %780 = vmatpush.msra.mxu0 %v777
    %781 = vmatpush.msra.mxu0 %v776
    %782 = vmatpush.msra.mxu0 %v775
    %783 = vmatpush.msra.mxu0 %v774
    %784 = vmatpush.msra.mxu0 %v773
    %785 = vmatpush.msra.mxu0 %v772
    %786 = vmatpush.msra.mxu0 %v771
    %787 = vmatpush.msra.mxu0 %v770
    %788 = vmatpush.msra.mxu0 %v769
    %789 = vmatpush.msra.mxu0 %v768
    %790 = vmatpush.msra.mxu0 %v767
    %791 = vmatpush.msra.mxu0 %v766
    %792 = vmatpush.msra.mxu0 %v765
    %793 = vmatpush.msra.mxu0 %v764
    %794 = vmatpush.msra.mxu0 %v763
    %795 = vmatmul.f32.gmra.mxu0 %v760
    %v796 = vpop.f32.mrf.mxu0
    %v797 = vadd.f32 0.0, %v796
    %798 = vmatmul.f32.gmra.mxu0 %v762
    %v799 = vpop.f32.mrf.mxu0
    %v800 = vadd.f32 0.0, %v799
    %801 = vdwg.mxu0
    %v802 = vrcp.pop %v797
    %v803 = vrcp.pop %v800
    %v804 = vmul.f32 %v760, %v802
    %v805 = vmul.f32 %v762, %v803
    %806 = vmatpush.msra.mxu0 %v673
    %807 = vmatpush.msra.mxu0 %v672
    %808 = vmatpush.msra.mxu0 %v671
    %809 = vmatpush.msra.mxu0 %v670
    %810 = vmatpush.msra.mxu0 %v669
    %811 = vmatpush.msra.mxu0 %v668
    %812 = vmatpush.msra.mxu0 %v667
    %813 = vmatpush.msra.mxu0 %v666
    %814 = vmatpush.msra.mxu0 %v665
    %815 = vmatpush.msra.mxu0 %v664
    %816 = vmatpush.msra.mxu0 %v663
    %817 = vmatpush.msra.mxu0 %v662
    %818 = vmatpush.msra.mxu0 %v661
    %819 = vmatpush.msra.mxu0 %v660
    %820 = vmatpush.msra.mxu0 %v659
    %821 = vmatpush.msra.mxu0 %v658
    %822 = vmatmul.f32.gmra.mxu0 %v804
    %v823 = vpop.f32.mrf.mxu0
    %v824 = vadd.f32 0.0, %v823
    %825 = vmatmul.f32.gmra.mxu0 %v805
    %v826 = vpop.f32.mrf.mxu0
    %v827 = vadd.f32 0.0, %v826
    %828 = vdwg.mxu0
    %v829 = vld [vmem:[%s15] sm:$0xff]
    %v830 = vld [vmem:[%s15 + $0x8] sm:$0xff]
    %v831 = vld [vmem:[%s15 + $0x10] sm:$0xff]
    %v832 = vld [vmem:[%s15 + $0x18] sm:$0xff]
    %v833 = vld [vmem:[%s16] sm:$0x1]
    %v835 = vperm.slane %v833, 0
    %v838 = vsel %vm84, %v824, 0
    %v841 = vsel %vm84, %v827, 0
    %843 = vmatpush.msra.mxu0 0.0
    %844 = vmatpush.msra.mxu0 0.0
    %845 = vmatpush.msra.mxu0 0.0
    %846 = vmatpush.msra.mxu0 0.0
    %847 = vmatpush.msra.mxu0 0.0
    %848 = vmatpush.msra.mxu0 0.0
    %849 = vmatpush.msra.mxu0 0.0
    %850 = vmatpush.msra.mxu0 0.0
    %851 = vmatpush.msra.mxu0 0.0
    %852 = vmatpush.msra.mxu0 0.0
    %853 = vmatpush.msra.mxu0 0.0
    %854 = vmatpush.msra.mxu0 0.0
    %855 = vmatpush.msra.mxu0 %v832
    %856 = vmatpush.msra.mxu0 %v831
    %857 = vmatpush.msra.mxu0 %v830
    %858 = vmatpush.msra.mxu0 %v829
    %859 = vmatmul.f32.gmra.mxu0 %v838
    %v860 = vpop.f32.mrf.mxu0
    %v861 = vadd.f32 %v835, %v860
    %862 = vmatmul.f32.gmra.mxu0 %v841
    %v863 = vpop.f32.mrf.mxu0
    %v864 = vadd.f32 %v835, %v863
    %865 = vdwg.mxu0
    %v866 = vadd.f32 %v263, %v861
    %v867 = vadd.f32 %v264, %v864
    %v868 = vsel %vm84, %v866, 0.0
    %869 = vadd.xlane.f32.xlu0 %v868
    %v870 = vpop.xlane.xlu0 %869
    %v871 = vsel %vm84, %v867, 0.0
    %872 = vadd.xlane.f32.xlu0 %v871
    %v873 = vpop.xlane.xlu0 %872
    %v874 = vrcp.pop 32.0
    %v875 = vmul.f32 32.0, %v874
    %v876 = vsub.f32 1.0, %v875
    %v877 = vmul.f32 %v874, %v876
    %v878 = vadd.f32 %v874, %v877
    %vm879 = vweird.f32 %v874
    %v880 = vsel %vm879, %v874, %v878
    %v881 = vmul.f32 %v870, %v880
    %v882 = vmul.f32 %v873, %v880
    %v883 = vsub.f32 %v866, %v881
    %v884 = vsub.f32 %v867, %v882
    %v885 = vmul.f32 %v883, %v883
    %v886 = vmul.f32 %v884, %v884
    %v887 = vsel %vm84, %v885, 0.0
    %888 = vadd.xlane.f32.xlu0 %v887
    %v889 = vpop.xlane.xlu0 %888
    %v890 = vsel %vm84, %v886, 0.0
    %891 = vadd.xlane.f32.xlu0 %v890
    %v892 = vpop.xlane.xlu0 %891
    %v893 = vmul.f32 %v889, %v880
    %v894 = vmul.f32 %v892, %v880
    %v895 = vadd.f32 %v893, 1e-05
    %v896 = vadd.f32 %v894, 1e-05
    %v897 = vrsqrt.pop %v895
    %v898 = vmul.f32 %v897, %v895
    %v899 = vmul.f32 %v898, %v897
    %v900 = vmul.f32 0.5, %v899
    %v901 = vsub.f32 1.5, %v900
    %v902 = vmul.f32 %v897, %v901
    %vm903 = vweird.f32 %v895
    %vm904 = vweird.f32 %v897
    %vm905 = vmor %vm903, %vm904
    %v906 = vsel %vm905, %v897, %v902
    %v907 = vrsqrt.pop %v896
    %v908 = vmul.f32 %v907, %v896
    %v909 = vmul.f32 %v908, %v907
    %v910 = vmul.f32 0.5, %v909
    %v911 = vsub.f32 1.5, %v910
    %v912 = vmul.f32 %v907, %v911
    %vm913 = vweird.f32 %v896
    %vm914 = vweird.f32 %v907
    %vm915 = vmor %vm913, %vm914
    %v916 = vsel %vm915, %v907, %v912
    %v917 = vmul.f32 %v883, %v906
    %v918 = vmul.f32 %v884, %v916
    %v919 = vld [vmem:[%s17] sm:$0x1]
    %v921 = vperm.slane %v919, 0
    %v923 = vmul.f32 %v917, %v921
    %v924 = vmul.f32 %v918, %v921
    %v925 = vld [vmem:[%s18] sm:$0x1]
    %v927 = vperm.slane %v925, 0
    %v929 = vadd.f32 %v923, %v927
    %v930 = vadd.f32 %v924, %v927
    %v931 = vld [vmem:[%s19] sm:$0xff]
    %v932 = vld [vmem:[%s19 + $0x8] sm:$0xff]
    %v933 = vld [vmem:[%s19 + $0x10] sm:$0xff]
    %v934 = vld [vmem:[%s19 + $0x18] sm:$0xff]
    %v935 = vld [vmem:[%s19 + $0x20] sm:$0xff]
    %v936 = vld [vmem:[%s19 + $0x28] sm:$0xff]
    %v937 = vld [vmem:[%s19 + $0x30] sm:$0xff]
    %v938 = vld [vmem:[%s19 + $0x38] sm:$0xff]
    %v940 = vsel %vm84, %v929, 0
    %v943 = vsel %vm84, %v930, 0
    %945 = vmatpush.msra.mxu0 0.0
    %946 = vmatpush.msra.mxu0 0.0
    %947 = vmatpush.msra.mxu0 0.0
    %948 = vmatpush.msra.mxu0 0.0
    %949 = vmatpush.msra.mxu0 0.0
    %950 = vmatpush.msra.mxu0 0.0
    %951 = vmatpush.msra.mxu0 0.0
    %952 = vmatpush.msra.mxu0 0.0
    %953 = vmatpush.msra.mxu0 0.0
    %954 = vmatpush.msra.mxu0 0.0
    %955 = vmatpush.msra.mxu0 0.0
    %956 = vmatpush.msra.mxu0 0.0
    %957 = vmatpush.msra.mxu0 %v937
    %958 = vmatpush.msra.mxu0 %v935
    %959 = vmatpush.msra.mxu0 %v933
    %960 = vmatpush.msra.mxu0 %v931
    %961 = vmatmul.f32.gmra.mxu0 %v940
    %v962 = vpop.f32.mrf.mxu0
    %v963 = vadd.f32 0.0, %v962
    %964 = vmatmul.f32.gmra.mxu0 %v943
    %v965 = vpop.f32.mrf.mxu0
    %v966 = vadd.f32 0.0, %v965
    %967 = vdwg.mxu0
    %968 = vmatpush.msra.mxu0 0.0
    %969 = vmatpush.msra.mxu0 0.0
    %970 = vmatpush.msra.mxu0 0.0
    %971 = vmatpush.msra.mxu0 0.0
    %972 = vmatpush.msra.mxu0 0.0
    %973 = vmatpush.msra.mxu0 0.0
    %974 = vmatpush.msra.mxu0 0.0
    %975 = vmatpush.msra.mxu0 0.0
    %976 = vmatpush.msra.mxu0 0.0
    %977 = vmatpush.msra.mxu0 0.0
    %978 = vmatpush.msra.mxu0 0.0
    %979 = vmatpush.msra.mxu0 0.0
    %980 = vmatpush.msra.mxu0 %v938
    %981 = vmatpush.msra.mxu0 %v936
    %982 = vmatpush.msra.mxu0 %v934
    %983 = vmatpush.msra.mxu0 %v932
    %984 = vmatmul.f32.gmra.mxu0 %v940
    %v985 = vpop.f32.mrf.mxu0
    %v986 = vadd.f32 0.0, %v985
    %987 = vmatmul.f32.gmra.mxu0 %v943
    %v988 = vpop.f32.mrf.mxu0
    %v989 = vadd.f32 0.0, %v988
    %990 = vdwg.mxu0
    %v991 = vld [vmem:[%s20] sm:$0xff]
    %v992 = vld [vmem:[%s20 + $0x8] sm:$0xff]
    %v993 = vld [vmem:[%s20 + $0x10] sm:$0xff]
    %v994 = vld [vmem:[%s20 + $0x18] sm:$0xff]
    %v995 = vmul.f32 %v963, %v991
    %v996 = vmul.f32 %v986, %v992
    %v997 = vmul.f32 %v966, %v993
    %v998 = vmul.f32 %v989, %v994
    %v999 = vld [vmem:[%s21] sm:$0x3]
    %v1001 = vsel %vm318, %v999, 0
    %1003 = vmatpush.msra.mxu0 0.0
    %1004 = vmatpush.msra.mxu0 0.0
    %1005 = vmatpush.msra.mxu0 0.0
    %1006 = vmatpush.msra.mxu0 0.0
    %1007 = vmatpush.msra.mxu0 0.0
    %1008 = vmatpush.msra.mxu0 0.0
    %1009 = vmatpush.msra.mxu0 0.0
    %1010 = vmatpush.msra.mxu0 0.0
    %1011 = vmatpush.msra.mxu0 0.0
    %1012 = vmatpush.msra.mxu0 0.0
    %1013 = vmatpush.msra.mxu0 0.0
    %1014 = vmatpush.msra.mxu0 0.0
    %1015 = vmatpush.msra.mxu0 0.0
    %1016 = vmatpush.msra.mxu0 0.0
    %1017 = vmatpush.msra.mxu0 %v997
    %1018 = vmatpush.msra.mxu0 %v995
    %1019 = vmatmul.f32.gmra.mxu0 %v1001
    %v1020 = vpop.f32.mrf.mxu0
    %v1021 = vadd.f32 0.0, %v1020
    %1022 = vdwg.mxu0
    %1023 = vmatpush.msra.mxu0 0.0
    %1024 = vmatpush.msra.mxu0 0.0
    %1025 = vmatpush.msra.mxu0 0.0
    %1026 = vmatpush.msra.mxu0 0.0
    %1027 = vmatpush.msra.mxu0 0.0
    %1028 = vmatpush.msra.mxu0 0.0
    %1029 = vmatpush.msra.mxu0 0.0
    %1030 = vmatpush.msra.mxu0 0.0
    %1031 = vmatpush.msra.mxu0 0.0
    %1032 = vmatpush.msra.mxu0 0.0
    %1033 = vmatpush.msra.mxu0 0.0
    %1034 = vmatpush.msra.mxu0 0.0
    %1035 = vmatpush.msra.mxu0 0.0
    %1036 = vmatpush.msra.mxu0 0.0
    %1037 = vmatpush.msra.mxu0 %v998
    %1038 = vmatpush.msra.mxu0 %v996
    %1039 = vmatmul.f32.gmra.mxu0 %v1001
    %v1040 = vpop.f32.mrf.mxu0
    %v1041 = vadd.f32 0.0, %v1040
    %1042 = vdwg.mxu0
    %v1045 = vrot.slane %v1041, 6
    %vm1046 = vcmask 1041408
    %v1047 = vsel %vm1046, %v1021, %v1045
    %1049 = vst [vmem:[#allocation2] sm:$0xf] %v1047
    // Predicated region
    $region90: #{tpu_custom_call.1} parent=1 // pred_check
      _
    $region91: #{tpu_custom_call.1} parent=1 // pred_check_branch
      %1051 = sbr.rel (0) target = $region93
    $region92: #{tpu_custom_call.1} parent=1 // pred_region
      %1053 = vsyncadd [#allocation3], 0
      %s1055 = sshll.u32 [#allocation2], 4
      %s1056 = int_to_ptr.vmem [resolvable:$true] %s1055
      %s1057 = sshll.u32 %s22, 4
      %s1058 = int_to_ptr.hbm [resolvable:$true] %s1057
      %1060 = dma.vmem_to_hbm [thread:$0]  %s1056, 64, %s1058, [#allocation3]
    $region93: #{tpu_custom_call.1} parent=1 // pred_fallthru
      _
    // Predicated region
    $region94: #{tpu_custom_call.1} parent=1 // pred_check
      _
    $region95: #{tpu_custom_call.1} parent=1 // pred_check_branch
      %1062 = sbr.rel (0) target = $region97
    $region96: #{tpu_custom_call.1} parent=1 // pred_region
      %1064 = dma.done [#allocation3], 64
    $region97: #{tpu_custom_call.1} parent=1 // pred_fallthru
      _
    %1065 = vsyncpa [#allocation3], 1

</llo_original>
